<compile_context>
chip_gen: v5e
topology: v5e:2x2
jax: 0.10.0
libtpu: 0.0.40
codegen_flags: <defaults>
</compile_context>

<pallas_src>
import functools

import jax
import jax.numpy as jnp
from jax import lax
from jax.experimental import pallas as pl
from jax.experimental.pallas import tpu as pltpu


_LANE = 128
_SUBLANE = 8

# VMEM budget for ALL double-buffered input tiles (pred + target + both masks,
# masks counted at their lane-padded (br,128) footprint).  Kept well under the
# explicit 48 MiB scoped-VMEM limit below so there is headroom for the output
# blocks and compiler internals.  Sized against v7x's 64 MiB *physical* VMEM
# (the smallest generation), not against 128 MiB.
_INPUT_VMEM_BUDGET = 28 * 1024 * 1024
_VMEM_LIMIT_BYTES = 48 * 1024 * 1024


def _round_up(x: int, m: int) -> int:
    return ((x + m - 1) // m) * m


def _loss_tile_kernel(target_ref, pred_ref, mask1_ref, mask2_ref, part_ref, *,
                      rows_total: int):
    """One row-tile of the fused masked loss.

    target/pred tile: [br, D]; mask tiles: [br, 1]; partials out: [1, 8, 128].
    The ragged last tile (rows beyond `rows_total`) is neutralized in-kernel.
    """
    br = target_ref.shape[0]
    i = pl.program_id(0)

    # Row-validity for the ragged last tile.  Applied before any cross-row sum
    # so that garbage rows (arbitrary bit patterns, possibly Inf/NaN) cannot
    # pollute the partial sums (0 * NaN = NaN is NOT safe).
    row = i * br + lax.broadcasted_iota(jnp.int32, (br, 1), 0)
    valid = row < rows_total                                     # [br, 1] bool

    diff = pred_ref[...].astype(jnp.float32) - target_ref[...].astype(jnp.float32)

    # Reduce-then-mask: the [br, D] lane reduce goes to the XLU (idle slot);
    # the mask multiplies only touch the [br, 1] column afterwards.
    rowsq = jnp.sum(diff * diff, axis=-1, keepdims=True)         # [br, 1]
    rowsq = jnp.where(valid, rowsq, 0.0)

    m1 = jnp.where(valid, mask1_ref[...].astype(jnp.float32), 0.0)   # [br, 1]
    m2 = jnp.where(valid, mask2_ref[...].astype(jnp.float32), 0.0)   # [br, 1]

    num = jnp.sum(rowsq * m1)          # sum_r m1_r * sum_d diff^2
    m1_sum = jnp.sum(m1)               # sum_r m1_r
    dm = m1 - m2
    msq = jnp.sum(dm * dm)             # sum_r (m1 - m2)^2

    # Pack the 3 scalar partials into a lane-dense (8, 128) tile (unmasked store).
    lane = lax.broadcasted_iota(jnp.int32, part_ref.shape, dimension=2)
    part_ref[...] = jnp.where(
        lane == 0, num,
        jnp.where(lane == 1, m1_sum,
                  jnp.where(lane == 2, msq, 0.0)))


def _auto_block_rows(rows: int, d: int, in_dtype, mask_dtype) -> int:
    """Row-tile size from a VMEM byte budget (lane-padded widths, 2 buffers)."""
    in_row_bytes = _round_up(d, _LANE) * jnp.dtype(in_dtype).itemsize
    # A (br, 1) mask block occupies br * 128 * itemsize bytes in VMEM.
    mask_row_bytes = _LANE * jnp.dtype(mask_dtype).itemsize
    # 2 pipeline buffers x (target + pred + mask1 + mask2) per row.
    per_row = 2 * (2 * in_row_bytes + 2 * mask_row_bytes)
    br = _INPUT_VMEM_BUDGET // max(1, per_row)
    br = max(_SUBLANE, (br // _SUBLANE) * _SUBLANE)
    return min(br, _round_up(rows, _SUBLANE))


def make_multi_losses1(alpha: float, beta: float, block_rows: int | None = None):
    """Returns a jitted callable (target, pred, mask1, mask2) -> scalar loss.

    pred/target may be bf16 (recommended: halves HBM traffic); accumulation is
    always f32 in-kernel.
    """
    alpha = float(alpha)
    beta = float(beta)

    @jax.jit
    def forward(target, pred, mask1, mask2):
        N, L, D = target.shape
        R = N * L

        # Lane-dense 2D layout: rows on the sublane axis, D on the lane axis.
        t = target.reshape(R, D)
        p = pred.reshape(R, D)
        m1 = mask1.reshape(R, 1)
        m2 = mask2.reshape(R, 1)

        if block_rows is None:
            br = _auto_block_rows(R, D, target.dtype, mask1.dtype)
        else:
            br = max(_SUBLANE, _round_up(int(block_rows), _SUBLANE))
            br = min(br, _round_up(R, _SUBLANE))

        num_tiles = pl.cdiv(R, br)
        kernel = functools.partial(_loss_tile_kernel, rows_total=R)

        partials = pl.pallas_call(
            kernel,
            out_shape=jax.ShapeDtypeStruct((num_tiles, 8, 128), jnp.float32),
            grid=(num_tiles,),
            in_specs=[
                pl.BlockSpec((br, D), lambda i: (i, 0)),   # target tile
                pl.BlockSpec((br, D), lambda i: (i, 0)),   # pred tile
                pl.BlockSpec((br, 1), lambda i: (i, 0)),   # mask1 tile
                pl.BlockSpec((br, 1), lambda i: (i, 0)),   # mask2 tile
            ],
            out_specs=pl.BlockSpec((1, 8, 128), lambda i: (i, 0, 0)),
            compiler_params=pltpu.CompilerParams(
                dimension_semantics=("parallel",),
                vmem_limit_bytes=_VMEM_LIMIT_BYTES,
            ),
        )(t, p, m1, m2)

        # Tiny final reduce + combine (fused by XLA; O(num_tiles) work).
        num_tot = jnp.sum(partials[:, 0, 0])
        m1_tot = jnp.sum(partials[:, 0, 1])
        msq_tot = jnp.sum(partials[:, 0, 2])

        # NOTE: matches reference behavior (NaN/Inf if mask1 sums to zero).
        pred_loss = num_tot / (jnp.float32(D) * m1_tot)
        mask_loss = msq_tot / jnp.float32(N * L)
        return alpha * pred_loss + beta * mask_loss

    return forward


def _reference(target, pred, mask1, mask2, alpha, beta):
    pred_loss = jnp.mean((pred - target) ** 2, axis=-1)
    pred_loss = jnp.sum(pred_loss * mask1) / jnp.sum(mask1)
    mask_loss = jnp.mean((mask1 - mask2) ** 2)
    return alpha * pred_loss + beta * mask_loss


if __name__ == "__main__":
    alpha, beta = 0.7, 0.3

    # Case 1: N=2, L=8 patches, p=4 -> D=48, explicit small tile (2 full tiles).
    N, L, p = 2, 8, 4
    D = p * p * 3
    key = jax.random.PRNGKey(0)
    k1, k2, k3, k4 = jax.random.split(key, 4)
    target = jax.random.normal(k1, (N, L, D), dtype=jnp.float32)
    pred = jax.random.normal(k2, (N, L, D), dtype=jnp.float32)
    mask1 = (jax.random.uniform(k3, (N, L)) > 0.5).astype(jnp.float32)
    mask1 = mask1.at[0, 0].set(1.0)              # ensure not all zeros
    mask2 = jax.random.uniform(k4, (N, L), dtype=jnp.float32)

    loss_fn = make_multi_losses1(alpha, beta, block_rows=8)
    loss = jax.block_until_ready(loss_fn(target, pred, mask1, mask2))
    ref = _reference(target, pred, mask1, mask2, alpha, beta)
    assert jnp.allclose(loss, ref, rtol=1e-5, atol=1e-6), (loss, ref)

    # Case 2: ragged last tile (R=30 rows, block_rows=16 -> tiles of 16 and 14).
    N2, L2, D2 = 3, 10, 48
    kk = jax.random.split(jax.random.PRNGKey(1), 4)
    t2 = jax.random.normal(kk[0], (N2, L2, D2), dtype=jnp.float32)
    p2 = jax.random.normal(kk[1], (N2, L2, D2), dtype=jnp.float32)
    m1b = (jax.random.uniform(kk[2], (N2, L2)) > 0.5).astype(jnp.float32)
    m1b = m1b.at[0, 0].set(1.0)
    m2b = jax.random.uniform(kk[3], (N2, L2), dtype=jnp.float32)
    loss_fn2 = make_multi_losses1(alpha, beta, block_rows=16)
    loss2 = jax.block_until_ready(loss_fn2(t2, p2, m1b, m2b))
    ref2 = _reference(t2, p2, m1b, m2b, alpha, beta)
    assert jnp.allclose(loss2, ref2, rtol=1e-5, atol=1e-6), (loss2, ref2)

    # Case 3: bf16 pred/target (halved HBM traffic) + auto tile heuristic +
    # ragged tile; reference uses the same f32 up-cast the kernel performs.
    t3 = t2.astype(jnp.bfloat16)
    p3 = p2.astype(jnp.bfloat16)
    loss_fn3 = make_multi_losses1(alpha, beta)   # auto tile size
    loss3 = jax.block_until_ready(loss_fn3(t3, p3, m1b, m2b))
    ref3 = _reference(t3.astype(jnp.float32), p3.astype(jnp.float32),
                      m1b, m2b, alpha, beta)
    assert jnp.allclose(loss3, ref3, rtol=1e-5, atol=1e-6), (loss3, ref3)

    print("KERNEL_OK")
</pallas_src>

<mosaic_0001>
module attributes {stable_mosaic.version = 11 : i64} {
  func.func @_loss_tile_kernel(%arg0: i32, %arg1: memref<8x48xf32, #tpu.memory_space<vmem>>, %arg2: memref<8x48xf32, #tpu.memory_space<vmem>>, %arg3: memref<8x1xf32, #tpu.memory_space<vmem>>, %arg4: memref<8x1xf32, #tpu.memory_space<vmem>>, %arg5: memref<1x8x128xf32, #tpu.memory_space<vmem>>) attributes {dimension_semantics = [#tpu.dimension_semantics<parallel>], iteration_bounds = array<i64: 2>, scalar_prefetch = 0 : i64, scratch_operands = 0 : i64, tpu.core_type = #tpu.core_type<tc>, window_params = [{transform_indices = @transform_0, window_bounds = array<i64: 8, 48>}, {transform_indices = @transform_1, window_bounds = array<i64: 8, 48>}, {transform_indices = @transform_2, window_bounds = array<i64: 8, 1>}, {transform_indices = @transform_3, window_bounds = array<i64: 8, 1>}, {transform_indices = @transform_4, window_bounds = array<i64: 1, 8, 128>}]} {
    %c8_i32 = arith.constant 8 : i32
    %0 = arith.muli %arg0, %c8_i32 : i32
    %1 = tpu.iota {dimensions = array<i32: 0>} : vector<8x1xi32>
    %2 = vector.broadcast %0 : i32 to vector<8x1xi32>
    %3 = arith.addi %2, %1 : vector<8x1xi32>
    %c16_i32 = arith.constant 16 : i32
    %4 = vector.broadcast %c16_i32 : i32 to vector<8x1xi32>
    %5 = arith.cmpi slt, %3, %4 : vector<8x1xi32>
    %c0 = arith.constant 0 : index
    %c0_0 = arith.constant 0 : index
    %6 = vector.load %arg2[%c0, %c0_0] : memref<8x48xf32, #tpu.memory_space<vmem>>, vector<8x48xf32>
    %c0_1 = arith.constant 0 : index
    %c0_2 = arith.constant 0 : index
    %7 = vector.load %arg1[%c0_1, %c0_2] : memref<8x48xf32, #tpu.memory_space<vmem>>, vector<8x48xf32>
    %8 = arith.subf %6, %7 : vector<8x48xf32>
    %9 = arith.mulf %8, %8 : vector<8x48xf32>
    %cst = arith.constant dense<0.000000e+00> : vector<8xf32>
    %10 = vector.multi_reduction <add>, %9, %cst [1] : vector<8x48xf32> to vector<8xf32>
    %11 = vector.shape_cast %10 : vector<8xf32> to vector<8x1xf32>
    %cst_3 = arith.constant 0.000000e+00 : f32
    %12 = vector.broadcast %cst_3 : f32 to vector<8x1xf32>
    %13 = arith.select %5, %11, %12 : vector<8x1xi1>, vector<8x1xf32>
    %c0_4 = arith.constant 0 : index
    %c0_5 = arith.constant 0 : index
    %14 = vector.load %arg3[%c0_4, %c0_5] : memref<8x1xf32, #tpu.memory_space<vmem>>, vector<8x1xf32>
    %cst_6 = arith.constant 0.000000e+00 : f32
    %15 = vector.broadcast %cst_6 : f32 to vector<8x1xf32>
    %16 = arith.select %5, %14, %15 : vector<8x1xi1>, vector<8x1xf32>
    %c0_7 = arith.constant 0 : index
    %c0_8 = arith.constant 0 : index
    %17 = vector.load %arg4[%c0_7, %c0_8] : memref<8x1xf32, #tpu.memory_space<vmem>>, vector<8x1xf32>
    %cst_9 = arith.constant 0.000000e+00 : f32
    %18 = vector.broadcast %cst_9 : f32 to vector<8x1xf32>
    %19 = arith.select %5, %17, %18 : vector<8x1xi1>, vector<8x1xf32>
    %20 = arith.mulf %13, %16 : vector<8x1xf32>
    %21 = vector.shape_cast %20 : vector<8x1xf32> to vector<1x8x1xf32>
    %cst_10 = arith.constant dense<0.000000e+00> : vector<1xf32>
    %22 = vector.multi_reduction <add>, %21, %cst_10 [1, 2] : vector<1x8x1xf32> to vector<1xf32>
    %23 = vector.shape_cast %22 : vector<1xf32> to vector<1x1x1xf32>
    %24 = vector.extract %23[0, 0, 0] : f32 from vector<1x1x1xf32>
    %25 = vector.shape_cast %16 : vector<8x1xf32> to vector<1x8x1xf32>
    %cst_11 = arith.constant dense<0.000000e+00> : vector<1xf32>
    %26 = vector.multi_reduction <add>, %25, %cst_11 [1, 2] : vector<1x8x1xf32> to vector<1xf32>
    %27 = vector.shape_cast %26 : vector<1xf32> to vector<1x1x1xf32>
    %28 = vector.extract %27[0, 0, 0] : f32 from vector<1x1x1xf32>
    %29 = arith.subf %16, %19 : vector<8x1xf32>
    %30 = arith.mulf %29, %29 : vector<8x1xf32>
    %31 = vector.shape_cast %30 : vector<8x1xf32> to vector<1x8x1xf32>
    %cst_12 = arith.constant dense<0.000000e+00> : vector<1xf32>
    %32 = vector.multi_reduction <add>, %31, %cst_12 [1, 2] : vector<1x8x1xf32> to vector<1xf32>
    %33 = vector.shape_cast %32 : vector<1xf32> to vector<1x1x1xf32>
    %34 = vector.extract %33[0, 0, 0] : f32 from vector<1x1x1xf32>
    %35 = tpu.iota {dimensions = array<i32: 2>} : vector<1x8x128xi32>
    %c0_i32 = arith.constant 0 : i32
    %36 = vector.broadcast %c0_i32 : i32 to vector<1x8x128xi32>
    %37 = arith.cmpi eq, %35, %36 : vector<1x8x128xi32>
    %c1_i32 = arith.constant 1 : i32
    %38 = vector.broadcast %c1_i32 : i32 to vector<1x8x128xi32>
    %39 = arith.cmpi eq, %35, %38 : vector<1x8x128xi32>
    %c2_i32 = arith.constant 2 : i32
    %40 = vector.broadcast %c2_i32 : i32 to vector<1x8x128xi32>
    %41 = arith.cmpi eq, %35, %40 : vector<1x8x128xi32>
    %cst_13 = arith.constant 0.000000e+00 : f32
    %42 = vector.broadcast %34 : f32 to vector<1x8x128xf32>
    %43 = vector.broadcast %cst_13 : f32 to vector<1x8x128xf32>
    %44 = arith.select %41, %42, %43 : vector<1x8x128xi1>, vector<1x8x128xf32>
    %45 = vector.broadcast %28 : f32 to vector<1x8x128xf32>
    %46 = arith.select %39, %45, %44 : vector<1x8x128xi1>, vector<1x8x128xf32>
    %47 = vector.broadcast %24 : f32 to vector<1x8x128xf32>
    %48 = arith.select %37, %47, %46 : vector<1x8x128xi1>, vector<1x8x128xf32>
    %c0_14 = arith.constant 0 : index
    %c0_15 = arith.constant 0 : index
    %c0_16 = arith.constant 0 : index
    %49 = vector.load %arg5[%c0_14, %c0_15, %c0_16] : memref<1x8x128xf32, #tpu.memory_space<vmem>>, vector<1x8x128xf32>
    tpu.vector_store %arg5[%c0_14, %c0_15, %c0_16], %48 {strides = array<i32>} : memref<1x8x128xf32, #tpu.memory_space<vmem>>, vector<1x8x128xf32>,
    return
  }
  func.func @transform_0(%arg0: i32) -> (i32, i32) {
    %c0_i32 = arith.constant 0 : i32
    %c0_i32_0 = arith.constant 0 : i32
    return %arg0, %c0_i32 : i32, i32
  }
  func.func @transform_1(%arg0: i32) -> (i32, i32) {
    %c0_i32 = arith.constant 0 : i32
    %c0_i32_0 = arith.constant 0 : i32
    return %arg0, %c0_i32 : i32, i32
  }
  func.func @transform_2(%arg0: i32) -> (i32, i32) {
    %c0_i32 = arith.constant 0 : i32
    %c0_i32_0 = arith.constant 0 : i32
    return %arg0, %c0_i32 : i32, i32
  }
  func.func @transform_3(%arg0: i32) -> (i32, i32) {
    %c0_i32 = arith.constant 0 : i32
    %c0_i32_0 = arith.constant 0 : i32
    return %arg0, %c0_i32 : i32, i32
  }
  func.func @transform_4(%arg0: i32) -> (i32, i32, i32) {
    %c0_i32 = arith.constant 0 : i32
    %c0_i32_0 = arith.constant 0 : i32
    %c0_i32_1 = arith.constant 0 : i32
    return %arg0, %c0_i32, %c0_i32_0 : i32, i32, i32
  }
}

</mosaic_0001>

<llo_original>
// kernel: forward.1
$region0: #{forward.1}
  #allocation0 [shape = 'u32[]', space=smem, size = 0x4, offset = 0x4, fixed_abs, tag = 'smem constant byte address 0x4 - core index']
  #allocation1 [shape = 'u32[72,128]{1,0:T(1,128)}', space=vmem, size = 0x9000, scoped, tag = 'internal scratch']
  %s0 = inlined_call_operand.vmem [shape: f32[16,48], index: 0, kind: input, shape index: {}]
  %s1 = inlined_call_operand.vmem [shape: f32[16,48], index: 1, kind: input, shape index: {}]
  %s2 = inlined_call_operand.vmem [shape: f32[16,1], index: 2, kind: input, shape index: {}]
  %s3 = inlined_call_operand.vmem [shape: f32[16,1], index: 3, kind: input, shape index: {}]
  %s4 = inlined_call_operand.vmem [shape: f32[2,8,128], index: 4, kind: output, shape index: {}]
  %s5 = sld [smem:[#allocation0]]
  $region49: #{forward.1} parent=0
    _
  %s7 = ssub.s32 1, %s5
  %s8 = scalar_select 0, %s7, %s5
  loop: start=0, step=1, limit=4
  $region2: #{forward.1} parent=0 // loop_pre_header
    _
  $region3: #{forward.1} parent=0 // loop_header
    %s10 = sphi 0, %s14
    %p11 = scmp.ge.s32.totalorder %s10, 4
    %s20 = sphi 0, %s22
    %s23 = sphi 0, %s20
    %s24 = sphi 0, %s23
    %s40 = sphi 0, %s24
    %s46 = sphi 0, %s48
    %s49 = sphi 0, %s46
    %s50 = sphi 0, %s49
    %s66 = sphi 0, %s50
    %s72 = sphi 0, %s74
    %s75 = sphi 0, %s72
    %s76 = sphi 0, %s75
    %s92 = sphi 0, %s76
    %s98 = sphi 0, %s100
    %s101 = sphi 0, %s98
    %s102 = sphi 0, %s101
    %s118 = sphi 0, %s102
    %s124 = sphi 0, %s126
    %s127 = sphi 0, %s124
    %s128 = sphi 0, %s127
    %s144 = sphi 0, %s128
  $region4: #{forward.1} parent=0 // loop_header_branch
    %13 = sbr.rel (%p11) target = $region8
  $region5: #{forward.1} parent=0 // loop_body
    %s15 = ssub.s32 %s10, 1
    %s16 = ssub.s32 %s10, 2
    %s17 = sadd.s32 %s10, 1
    %s18 = ssub.s32 %s10, %s17
    %p19 = scmp.eq.s32.totalorder %s18, 0
    %s21 = sadd.s32 %s20, 1
    %s22 = scalar_select %p19, %s20, %s21
    %p25 = pneg %p19
    %p26 = scmp.eq.s32.totalorder %s10, 1
    %p27 = por %p25, %p26
    %p28 = scmp.ne.s32.totalorder %s20, %s23
    %p29 = scmp.eq.s32.totalorder %s10, 0
    %p30 = por %p28, %p29
    %p31 = scmp.ne.s32.totalorder %s20, %s23
    %p32 = scmp.eq.s32.totalorder %s15, 1
    %p33 = por %p31, %p32
    %p34 = scmp.ne.s32.totalorder %s23, %s24
    %p35 = scmp.eq.s32.totalorder %s15, 0
    %p36 = por %p34, %p35
    %p37 = scmp.ne.s32.totalorder %s23, %s24
    %p38 = scmp.eq.s32.totalorder %s16, 1
    %p39 = por %p37, %p38
    %p41 = scmp.ne.s32.totalorder %s24, %s40
    %p42 = scmp.eq.s32.totalorder %s16, 0
    %p43 = por %p41, %p42
    %s44 = ssub.s32 %s10, %s17
    %p45 = scmp.eq.s32.totalorder %s44, 0
    %s47 = sadd.s32 %s46, 1
    %s48 = scalar_select %p45, %s46, %s47
    %p51 = pneg %p45
    %p52 = scmp.eq.s32.totalorder %s10, 1
    %p53 = por %p51, %p52
    %p54 = scmp.ne.s32.totalorder %s46, %s49
    %p55 = scmp.eq.s32.totalorder %s10, 0
    %p56 = por %p54, %p55
    %p57 = scmp.ne.s32.totalorder %s46, %s49
    %p58 = scmp.eq.s32.totalorder %s15, 1
    %p59 = por %p57, %p58
    %p60 = scmp.ne.s32.totalorder %s49, %s50
    %p61 = scmp.eq.s32.totalorder %s15, 0
    %p62 = por %p60, %p61
    %p63 = scmp.ne.s32.totalorder %s49, %s50
    %p64 = scmp.eq.s32.totalorder %s16, 1
    %p65 = por %p63, %p64
    %p67 = scmp.ne.s32.totalorder %s50, %s66
    %p68 = scmp.eq.s32.totalorder %s16, 0
    %p69 = por %p67, %p68
    %s70 = ssub.s32 %s10, %s17
    %p71 = scmp.eq.s32.totalorder %s70, 0
    %s73 = sadd.s32 %s72, 1
    %s74 = scalar_select %p71, %s72, %s73
    %p77 = pneg %p71
    %p78 = scmp.eq.s32.totalorder %s10, 1
    %p79 = por %p77, %p78
    %p80 = scmp.ne.s32.totalorder %s72, %s75
    %p81 = scmp.eq.s32.totalorder %s10, 0
    %p82 = por %p80, %p81
    %p83 = scmp.ne.s32.totalorder %s72, %s75
    %p84 = scmp.eq.s32.totalorder %s15, 1
    %p85 = por %p83, %p84
    %p86 = scmp.ne.s32.totalorder %s75, %s76
    %p87 = scmp.eq.s32.totalorder %s15, 0
    %p88 = por %p86, %p87
    %p89 = scmp.ne.s32.totalorder %s75, %s76
    %p90 = scmp.eq.s32.totalorder %s16, 1
    %p91 = por %p89, %p90
    %p93 = scmp.ne.s32.totalorder %s76, %s92
    %p94 = scmp.eq.s32.totalorder %s16, 0
    %p95 = por %p93, %p94
    %s96 = ssub.s32 %s10, %s17
    %p97 = scmp.eq.s32.totalorder %s96, 0
    %s99 = sadd.s32 %s98, 1
    %s100 = scalar_select %p97, %s98, %s99
    %p103 = pneg %p97
    %p104 = scmp.eq.s32.totalorder %s10, 1
    %p105 = por %p103, %p104
    %p106 = scmp.ne.s32.totalorder %s98, %s101
    %p107 = scmp.eq.s32.totalorder %s10, 0
    %p108 = por %p106, %p107
    %p109 = scmp.ne.s32.totalorder %s98, %s101
    %p110 = scmp.eq.s32.totalorder %s15, 1
    %p111 = por %p109, %p110
    %p112 = scmp.ne.s32.totalorder %s101, %s102
    %p113 = scmp.eq.s32.totalorder %s15, 0
    %p114 = por %p112, %p113
    %p115 = scmp.ne.s32.totalorder %s101, %s102
    %p116 = scmp.eq.s32.totalorder %s16, 1
    %p117 = por %p115, %p116
    %p119 = scmp.ne.s32.totalorder %s102, %s118
    %p120 = scmp.eq.s32.totalorder %s16, 0
    %p121 = por %p119, %p120
    %s122 = ssub.s32 %s10, %s17
    %p123 = scmp.eq.s32.totalorder %s122, 0
    %s125 = sadd.s32 %s124, 1
    %s126 = scalar_select %p123, %s124, %s125
    %p129 = pneg %p123
    %p130 = scmp.eq.s32.totalorder %s10, 1
    %p131 = por %p129, %p130
    %p132 = scmp.ne.s32.totalorder %s124, %s127
    %p133 = scmp.eq.s32.totalorder %s10, 0
    %p134 = por %p132, %p133
    %p135 = scmp.ne.s32.totalorder %s124, %s127
    %p136 = scmp.eq.s32.totalorder %s15, 1
    %p137 = por %p135, %p136
    %p138 = scmp.ne.s32.totalorder %s127, %s128
    %p139 = scmp.eq.s32.totalorder %s15, 0
    %p140 = por %p138, %p139
    %p141 = scmp.ne.s32.totalorder %s127, %s128
    %p142 = scmp.eq.s32.totalorder %s16, 1
    %p143 = por %p141, %p142
    %p145 = scmp.ne.s32.totalorder %s128, %s144
    %p146 = scmp.eq.s32.totalorder %s16, 0
    %p147 = por %p145, %p146
    %p148 = scmp.le.s32.totalorder 1, %s10
    %p149 = scmp.lt.s32.totalorder %s10, 3
    %p150 = pnand %p148, %p149
    %p151 = pneg %p150
    // Predicated region
    $region9: #{forward.1} parent=5 // pred_check
      _
    $region10: #{forward.1} parent=5 // pred_check_branch
      %153 = sbr.rel (%p150) target = $region12
    $region11: #{forward.1} parent=5 // pred_region
      %s154 = ssub.s32 %s10, 1
    $region12: #{forward.1} parent=5 // pred_fallthru
      _
    %p155 = scmp.lt.s32.totalorder %s10, 2
    // Predicated region
    $region13: #{forward.1} parent=5 // pred_check
      %p156 = pneg %p155
    $region14: #{forward.1} parent=5 // pred_check_branch
      %158 = sbr.rel (%p156) target = $region16
    $region15: #{forward.1} parent=5 // pred_region
      // Predicated region
      $region17: #{forward.1} parent=15 // pred_check
        %p159 = pneg %p30
      $region18: #{forward.1} parent=15 // pred_check_branch
        %161 = sbr.rel (%p159) target = $region20
      $region19: #{forward.1} parent=15 // pred_region
        %p162 = scmp.lt.s32.totalorder %s10, 1
        %s163 = scalar_select %p162, %s10, 1
        %s164 = smul.addr %s163, 8
        %s165 = scalar_lea.vmem %s0, %s164
      $region20: #{forward.1} parent=15 // pred_fallthru
        _
      // Predicated region
      $region21: #{forward.1} parent=15 // pred_check
        %p166 = pneg %p56
      $region22: #{forward.1} parent=15 // pred_check_branch
        %168 = sbr.rel (%p166) target = $region24
      $region23: #{forward.1} parent=15 // pred_region
        %p169 = scmp.lt.s32.totalorder %s10, 1
        %s170 = scalar_select %p169, %s10, 1
        %s171 = smul.addr %s170, 8
        %s172 = scalar_lea.vmem %s1, %s171
      $region24: #{forward.1} parent=15 // pred_fallthru
        _
      // Predicated region
      $region25: #{forward.1} parent=15 // pred_check
        %p173 = pneg %p82
      $region26: #{forward.1} parent=15 // pred_check_branch
        %175 = sbr.rel (%p173) target = $region28
      $region27: #{forward.1} parent=15 // pred_region
        %p176 = scmp.lt.s32.totalorder %s10, 1
        %s177 = scalar_select %p176, %s10, 1
        %s178 = smul.addr %s177, 8
        %s179 = scalar_lea.vmem %s2, %s178
      $region28: #{forward.1} parent=15 // pred_fallthru
        _
      // Predicated region
      $region29: #{forward.1} parent=15 // pred_check
        %p180 = pneg %p108
      $region30: #{forward.1} parent=15 // pred_check_branch
        %182 = sbr.rel (%p180) target = $region32
      $region31: #{forward.1} parent=15 // pred_region
        %p183 = scmp.lt.s32.totalorder %s10, 1
        %s184 = scalar_select %p183, %s10, 1
        %s185 = smul.addr %s184, 8
        %s186 = scalar_lea.vmem %s3, %s185
      $region32: #{forward.1} parent=15 // pred_fallthru
        _
    $region16: #{forward.1} parent=5 // pred_fallthru
      _
    %p187 = scmp.le.s32.totalorder 1, %s10
    %p188 = scmp.lt.s32.totalorder %s10, 3
    %p189 = pnand %p187, %p188
    %p190 = pneg %p189
    // Predicated region
    $region33: #{forward.1} parent=5 // pred_check
      _
    $region34: #{forward.1} parent=5 // pred_check_branch
      %192 = sbr.rel (%p189) target = $region36
    $region35: #{forward.1} parent=5 // pred_region
      %s193 = ssub.s32 %s10, 1
      %p194 = scmp.lt.s32.totalorder %s15, 1
      %s195 = scalar_select %p194, %s15, 1
      %s196 = smul.addr %s195, 8
      %s197 = scalar_lea.vmem %s0, %s196
      %p198 = pneg %p36
      %p199 = pneg %p33
      %p200 = scmp.lt.s32.totalorder %s15, 1
      %s201 = scalar_select %p200, %s15, 1
      %s202 = smul.addr %s201, 8
      %s203 = scalar_lea.vmem %s1, %s202
      %p204 = pneg %p62
      %p205 = pneg %p59
      %p206 = scmp.lt.s32.totalorder %s15, 1
      %s207 = scalar_select %p206, %s15, 1
      %s208 = smul.addr %s207, 8
      %s209 = scalar_lea.vmem %s2, %s208
      %p210 = pneg %p88
      %p211 = pneg %p85
      %p212 = scmp.lt.s32.totalorder %s15, 1
      %s213 = scalar_select %p212, %s15, 1
      %s214 = smul.addr %s213, 8
      %s215 = scalar_lea.vmem %s3, %s214
      %p216 = pneg %p114
      %p217 = pneg %p111
      %p218 = pneg %p140
      %p219 = pneg %p137
      %p220 = scmp.lt.s32.totalorder %s15, 1
      %s221 = scalar_select %p220, %s15, 1
      %s222 = smul.addr %s221, 8
      %s223 = scalar_lea.vmem %s4, %s222
      %p224 = scmp.lt.s32.totalorder %s15, 1
      %s225 = scalar_select %p224, %s15, 1
      %s226 = smul.addr %s225, 8
      %s227 = scalar_lea.vmem %s0, %s226
      %p228 = scmp.lt.s32.totalorder %s15, 1
      %s229 = scalar_select %p228, %s15, 1
      %s230 = smul.addr %s229, 8
      %s231 = scalar_lea.vmem %s1, %s230
      %p232 = scmp.lt.s32.totalorder %s15, 1
      %s233 = scalar_select %p232, %s15, 1
      %s234 = smul.addr %s233, 8
      %s235 = scalar_lea.vmem %s2, %s234
      %p236 = scmp.lt.s32.totalorder %s15, 1
      %s237 = scalar_select %p236, %s15, 1
      %s238 = smul.addr %s237, 8
      %s239 = scalar_lea.vmem %s3, %s238
      %p240 = scmp.lt.s32.totalorder %s15, 1
      %s241 = scalar_select %p240, %s15, 1
      %s242 = smul.addr %s241, 8
      %s243 = scalar_lea.vmem %s4, %s242
      %s244 = smul.u32 %s15, 8
      %v245 = vlaneseq
      %v246 = vshrl.u32 %v245, 7
      %v247 = vstv %s244
      %v248 = vadd.s32 %v247, %v246
      %vm249 = vcmp.lt.s32.totalorder %v248, 16
      %v250 = vld [vmem:[%s231] sm:$0xff]
      %v251 = vld [vmem:[%s227] sm:$0xff]
      %v252 = vsub.f32 %v250, %v251
      %v253 = vmul.f32 %v252, %v252
      %vm254 = vcmask 392192
      %v255 = vsel %vm254, %v253, 0.0
      %256 = vadd.xlane.f32.xlu0 %v255
      %v257 = vpop.xlane.xlu0 %256
      %v258 = vsel %vm249, %v257, 0.0
      %v259 = vld [vmem:[%s235] sm:$0xff]
      %v260 = vsel %vm249, %v259, 0.0
      %v261 = vld [vmem:[%s239] sm:$0xff]
      %v262 = vsel %vm249, %v261, 0.0
      %v263 = vmul.f32 %v258, %v260
      %vm264 = vcmask 7168
      %v265 = vsel %vm264, %v263, 0.0
      %266 = vadd.xlane.f32.xlu0 %v265
      %v267 = vpop.xlane.xlu0 %266
      %v268 = vrot.slane %v267, 4
      %v269 = vadd.f32 %v267, %v268
      %v270 = vrot.slane %v269, 2
      %v271 = vadd.f32 %v269, %v270
      %v272 = vrot.slane %v271, 1
      %v273 = vadd.f32 %v271, %v272
      %s274 = vtos %v273
      %v275 = vsel %vm264, %v260, 0.0
      %276 = vadd.xlane.f32.xlu0 %v275
      %v277 = vpop.xlane.xlu0 %276
      %v278 = vrot.slane %v277, 4
      %v279 = vadd.f32 %v277, %v278
      %v280 = vrot.slane %v279, 2
      %v281 = vadd.f32 %v279, %v280
      %v282 = vrot.slane %v281, 1
      %v283 = vadd.f32 %v281, %v282
      %s284 = vtos %v283
      %v285 = vsub.f32 %v260, %v262
      %v286 = vmul.f32 %v285, %v285
      %v287 = vsel %vm264, %v286, 0.0
      %288 = vadd.xlane.f32.xlu0 %v287
      %v289 = vpop.xlane.xlu0 %288
      %v290 = vrot.slane %v289, 4
      %v291 = vadd.f32 %v289, %v290
      %v292 = vrot.slane %v291, 2
      %v293 = vadd.f32 %v291, %v292
      %v294 = vrot.slane %v293, 1
      %v295 = vadd.f32 %v293, %v294
      %s296 = vtos %v295
      %v297 = vlaneseq
      %v298 = vand.u32 %v297, 127
      %vm299 = vcmp.eq.s32.totalorder %v298, 0
      %vm300 = vcmp.eq.s32.totalorder %v298, 1
      %vm301 = vcmp.eq.s32.totalorder %v298, 2
      %v302 = vstv %s296
      %v303 = vsel %vm301, %v302, 0.0
      %v304 = vstv %s284
      %v305 = vsel %vm300, %v304, %v303
      %v306 = vstv %s274
      %v307 = vsel %vm299, %v306, %v305
      %308 = vst [vmem:[%s243] sm:$0xff] %v307
      %p309 = scmp.lt.s32.totalorder %s15, 1
      %s310 = scalar_select %p309, %s15, 1
      %s311 = smul.addr %s310, 8
      %s312 = scalar_lea.vmem %s4, %s311
      // Predicated region
      $region37: #{forward.1} parent=35 // pred_check
        %p313 = pneg %p137
      $region38: #{forward.1} parent=35 // pred_check_branch
        %315 = sbr.rel (%p313) target = $region40
      $region39: #{forward.1} parent=35 // pred_region
        _
      $region40: #{forward.1} parent=35 // pred_fallthru
        _
    $region36: #{forward.1} parent=5 // pred_fallthru
      _
    %p316 = scmp.le.s32.totalorder 2, %s10
    // Predicated region
    $region41: #{forward.1} parent=5 // pred_check
      %p317 = pneg %p316
    $region42: #{forward.1} parent=5 // pred_check_branch
      %319 = sbr.rel (%p317) target = $region44
    $region43: #{forward.1} parent=5 // pred_region
      %s320 = ssub.s32 %s10, 2
      // Predicated region
      $region45: #{forward.1} parent=43 // pred_check
        %p321 = pneg %p143
      $region46: #{forward.1} parent=43 // pred_check_branch
        %323 = sbr.rel (%p321) target = $region48
      $region47: #{forward.1} parent=43 // pred_region
        %p324 = scmp.lt.s32.totalorder %s16, 1
        %s325 = scalar_select %p324, %s16, 1
        %s326 = smul.addr %s325, 8
        %s327 = scalar_lea.vmem %s4, %s326
      $region48: #{forward.1} parent=43 // pred_fallthru
        _
    $region44: #{forward.1} parent=5 // pred_fallthru
      _
  $region6: #{forward.1} parent=0 // loop_footer
    %s14 = sadd.s32 1, %s10
  $region7: #{forward.1} parent=0 // loop_footer_branch
    %9 = sbr.rel target = $region3
  $region8: #{forward.1} parent=0 // loop_exit
    _

</llo_original>
